<compile_context>
chip_gen: v7x
topology: tpu7x:2x2x1
jax: 0.10.0
libtpu: 0.0.40
codegen_flags: <defaults>
</compile_context>

<pallas_src>
import numpy as np
import jax
import jax.numpy as jnp
from jax.experimental import pallas as pl
from jax.experimental.pallas import tpu as pltpu


def _make_kernel(gen_noise):
    if gen_noise:
        def kernel(seed_ref,                  # scalar prefetch: (1,) i32 in SMEM
                   wbd_ref, x0_ref, sc_ref,   # VMEM inputs
                   loss_ref):                 # VMEM output
            sc = sc_ref[...]                  # (BC, 3): [sqrt_ab, sqrt_1m_ab, temb]
            a_col, s_col, temb_col = sc[:, 0:1], sc[:, 1:2], sc[:, 2:3]
            # per-tile decorrelated seed; bitstream differs from jax.random.normal
            pltpu.prng_seed(seed_ref[0] + pl.program_id(0))
            nz = pltpu.stateful_normal(x0_ref.shape, jnp.float32)
            x_t = a_col * x0_ref[...] + s_col * nz               # q_sample (VPU)
            pred = jnp.dot(wbd_ref[...], x_t,                     # channel mix (MXU)
                           preferred_element_type=jnp.float32,
                           precision=jax.lax.Precision.HIGHEST) + temb_col
            loss_ref[...] = (pred - nz) ** 2                      # MSE (VPU)
    else:
        def kernel(seed_ref,                           # unused in this path
                   wbd_ref, x0_ref, noise_ref, sc_ref,
                   loss_ref):
            del seed_ref
            sc = sc_ref[...]
            a_col, s_col, temb_col = sc[:, 0:1], sc[:, 1:2], sc[:, 2:3]
            nz = noise_ref[...]                                   # (BC, hw)
            x_t = a_col * x0_ref[...] + s_col * nz                # q_sample (VPU)
            pred = jnp.dot(wbd_ref[...], x_t,                     # channel mix (MXU)
                           preferred_element_type=jnp.float32,
                           precision=jax.lax.Precision.HIGHEST) + temb_col
            loss_ref[...] = (pred - nz) ** 2                      # MSE (VPU)
    return kernel


def _vmem_limits():
    """Per-generation VMEM sizing: ~60% of physical capacity as the tile-sizing
    budget and ~75% as the Mosaic scoped-VMEM limit (v5e/v6e: 128 MiB physical,
    v7x: 64 MiB).  Falls back to the smallest (v7x) assumption if the query
    fails."""
    try:
        cap = pltpu.get_tpu_info().vmem_capacity_bytes
    except Exception:
        cap = 64 * 1024 * 1024
    return int(cap * 0.60), int(cap * 0.75)


def _choose_hw_tile(BC, HW_pad, vmem_budget_bytes):
    """Lane-dense spatial tile (multiple of 128): as large as the VMEM budget
    allows (3 double-buffered f32 streams + ~2 live f32 temporaries per
    column), dividing HW_pad, and leaving >= 2 grid steps whenever
    HW_pad >= 256 (pipeline overlap + both v7x TensorCores)."""
    n128 = HW_pad // 128                                   # 128-lane column blocks
    bytes_per_block = (3 * 2 + 2) * BC * 128 * 4
    max_k = max(1, min(n128, vmem_budget_bytes // bytes_per_block))
    if n128 >= 2:
        max_k = min(max_k, n128 // 2)                      # guarantee >= 2 steps
    k = max_k
    while k > 1 and n128 % k != 0:
        k -= 1
    return 128 * k


def gaussian_diffusion_trainer(x_0, t, noise, sab, somab, w, temb_table,
                               *, seed=0, generate_noise_in_kernel=False):
    """x_0, noise: [B,C,H,W] f32; t: [B] int32; sab/somab: [T] f32;
    w: [C,C] f32; temb_table: [T,C] f32.  Returns per-element loss [B,C,H,W].
    If generate_noise_in_kernel=True, `noise` is ignored and sampled on-chip
    (same distribution, different bitstream)."""
    B, C, H, W = x_0.shape
    HW = H * W
    BC = B * C
    T = sab.shape[0]

    # OOB reads are unchecked on TPU -> clamp t before gathering coefficients.
    t = jnp.clip(t.astype(jnp.int32), 0, T - 1)

    # Pad flattened spatial axis to a multiple of 128 (lane-dense tiles).
    HW_pad = ((HW + 127) // 128) * 128
    pad = HW_pad - HW

    x0_f = x_0.reshape(BC, HW)
    if pad:
        x0_f = jnp.pad(x0_f, ((0, 0), (0, pad)))
    nz_f = None
    if not generate_noise_in_kernel:
        nz_f = noise.reshape(BC, HW)
        if pad:
            nz_f = jnp.pad(nz_f, ((0, 0), (0, pad)))

    # Per-row (row = b*C + c) coefficients packed into one tiny resident
    # operand: [:,0]=sqrt_ab[t_b], [:,1]=sqrt_1m_ab[t_b], [:,2]=temb[t_b, c]
    a_row = jnp.repeat(sab[t].astype(jnp.float32), C)
    s_row = jnp.repeat(somab[t].astype(jnp.float32), C)
    temb_row = temb_table[t].astype(jnp.float32).reshape(BC)
    scales = jnp.stack([a_row, s_row, temb_row], axis=1)             # (BC, 3)

    # Block-diagonal channel-mix weight: one (C,C) block per batch element.
    w_bd = jnp.kron(jnp.eye(B, dtype=jnp.float32), w.astype(jnp.float32))  # (BC, BC)

    vmem_budget, vmem_limit = _vmem_limits()
    hw_tile = _choose_hw_tile(BC, HW_pad, vmem_budget)
    n_tiles = HW_pad // hw_tile

    stream_spec = pl.BlockSpec((BC, hw_tile), lambda j, *_: (0, j))
    wbd_spec = pl.BlockSpec((BC, BC), lambda j, *_: (0, 0))           # resident
    scales_spec = pl.BlockSpec((BC, 3), lambda j, *_: (0, 0))         # resident

    in_specs = [wbd_spec, stream_spec]
    if not generate_noise_in_kernel:
        in_specs.append(stream_spec)
    in_specs.append(scales_spec)

    grid_spec = pltpu.PrefetchScalarGridSpec(
        num_scalar_prefetch=1,                    # PRNG seed -> SMEM
        grid=(n_tiles,),
        in_specs=in_specs,
        out_specs=pl.BlockSpec((BC, hw_tile), lambda j, *_: (0, j)),
    )

    n_stream = 2 if generate_noise_in_kernel else 3
    cost = pl.CostEstimate(
        flops=BC * HW_pad * (2 * BC + 7),         # q_sample + blockdiag dot + bias + mse
        transcendentals=0,
        bytes_accessed=n_stream * BC * HW_pad * 4 + (BC * BC + 3 * BC) * 4)

    seed_arr = jnp.asarray([seed], dtype=jnp.int32)
    call_args = [seed_arr, w_bd, x0_f]
    if not generate_noise_in_kernel:
        call_args.append(nz_f)
    call_args.append(scales)

    loss_flat = pl.pallas_call(
        _make_kernel(generate_noise_in_kernel),
        out_shape=jax.ShapeDtypeStruct((BC, HW_pad), jnp.float32),
        grid_spec=grid_spec,
        compiler_params=pltpu.CompilerParams(
            dimension_semantics=("parallel",),
            vmem_limit_bytes=vmem_limit),
        cost_estimate=cost,
    )(*call_args)

    if pad:
        loss_flat = loss_flat[:, :HW]
    return loss_flat.reshape(B, C, H, W)


def make_diffusion_buffers(beta_1, beta_T, T):
    # match torch: double precision for betas / cumprod, then .float() at use
    betas = np.linspace(beta_1, beta_T, T, dtype=np.float64)
    alphas = 1.0 - betas
    alphas_bar = np.cumprod(alphas, axis=0)
    sab = np.sqrt(alphas_bar).astype(np.float32)
    somab = np.sqrt(1.0 - alphas_bar).astype(np.float32)
    return jnp.asarray(sab), jnp.asarray(somab)


def reference_forward(x_0, t, noise, sab, somab, w, temb_table):
    B, C, H, W = x_0.shape
    a = sab[t].reshape(B, 1, 1, 1)
    s = somab[t].reshape(B, 1, 1, 1)
    x_t = a * x_0 + s * noise
    # channel mix as explicit f32 broadcast-sum (plain-f32 reference)
    pred = (w[None, :, :, None, None] * x_t[:, None, :, :, :]).sum(axis=2)
    pred = pred + temb_table[t].reshape(B, C, 1, 1)
    return (pred - noise) ** 2


if __name__ == "__main__":
    B, C, H, W = 2, 4, 16, 16
    T = 1000
    beta_1, beta_T = 1e-4, 0.02

    key = jax.random.PRNGKey(0)
    k_x, k_t, k_n, k_w, k_e = jax.random.split(key, 5)

    x_0 = jax.random.normal(k_x, (B, C, H, W), dtype=jnp.float32)
    # the torch forward samples t and noise internally; here they are sampled
    # deterministically in the wrapper and fed to the kernel (bit-exact test)
    t = jax.random.randint(k_t, (B,), 0, T, dtype=jnp.int32)
    noise = jax.random.normal(k_n, (B, C, H, W), dtype=jnp.float32)

    # deterministic synthetic model parameters
    w = 0.1 * jax.random.normal(k_w, (C, C), dtype=jnp.float32)
    temb_table = 0.1 * jax.random.normal(k_e, (T, C), dtype=jnp.float32)

    sab, somab = make_diffusion_buffers(beta_1, beta_T, T)

    loss = gaussian_diffusion_trainer(x_0, t, noise, sab, somab, w, temb_table)
    loss = jax.block_until_ready(loss)

    ref = reference_forward(x_0, t, noise, sab, somab, w, temb_table)
    assert loss.shape == (B, C, H, W)
    # tolerance slightly relaxed vs f32 reference for the MXU (HIGHEST) path
    np.testing.assert_allclose(np.asarray(loss), np.asarray(ref),
                               rtol=1e-4, atol=1e-5)
    print("KERNEL_OK")
</pallas_src>

<mosaic_0001>
module attributes {stable_mosaic.version = 11 : i64} {
  func.func @kernel(%arg0: i32, %arg1: memref<1xi32, #tpu.memory_space<smem>>, %arg2: memref<8x8xf32, #tpu.memory_space<vmem>>, %arg3: memref<8x128xf32, #tpu.memory_space<vmem>>, %arg4: memref<8x128xf32, #tpu.memory_space<vmem>>, %arg5: memref<8x3xf32, #tpu.memory_space<vmem>>, %arg6: memref<8x128xf32, #tpu.memory_space<vmem>>) attributes {dimension_semantics = [#tpu.dimension_semantics<parallel>], iteration_bounds = array<i64: 2>, scalar_prefetch = 1 : i64, scratch_operands = 0 : i64, tpu.core_type = #tpu.core_type<tc>, window_params = [{pipeline_mode = #tpu.pipeline_mode<synchronous>, transform_indices = @transform_0, window_bounds = array<i64: 8, 8>}, {transform_indices = @transform_1, window_bounds = array<i64: 8, 128>}, {transform_indices = @transform_2, window_bounds = array<i64: 8, 128>}, {pipeline_mode = #tpu.pipeline_mode<synchronous>, transform_indices = @transform_3, window_bounds = array<i64: 8, 3>}, {transform_indices = @transform_4, window_bounds = array<i64: 8, 128>}]} {
    %c0 = arith.constant 0 : index
    %c0_0 = arith.constant 0 : index
    %0 = vector.load %arg5[%c0, %c0_0] : memref<8x3xf32, #tpu.memory_space<vmem>>, vector<8x3xf32>
    %1 = vector.extract_strided_slice %0 {offsets = [0, 0], sizes = [8, 1], strides = [1, 1]} : vector<8x3xf32> to vector<8x1xf32>
    %2 = vector.extract_strided_slice %0 {offsets = [0, 1], sizes = [8, 1], strides = [1, 1]} : vector<8x3xf32> to vector<8x1xf32>
    %3 = vector.extract_strided_slice %0 {offsets = [0, 2], sizes = [8, 1], strides = [1, 1]} : vector<8x3xf32> to vector<8x1xf32>
    %c0_1 = arith.constant 0 : index
    %c0_2 = arith.constant 0 : index
    %4 = vector.load %arg4[%c0_1, %c0_2] : memref<8x128xf32, #tpu.memory_space<vmem>>, vector<8x128xf32>
    %c0_3 = arith.constant 0 : index
    %c0_4 = arith.constant 0 : index
    %5 = vector.load %arg3[%c0_3, %c0_4] : memref<8x128xf32, #tpu.memory_space<vmem>>, vector<8x128xf32>
    %6 = vector.broadcast %1 : vector<8x1xf32> to vector<8x128xf32>
    %7 = arith.mulf %6, %5 : vector<8x128xf32>
    %8 = vector.broadcast %2 : vector<8x1xf32> to vector<8x128xf32>
    %9 = arith.mulf %8, %4 : vector<8x128xf32>
    %10 = arith.addf %7, %9 : vector<8x128xf32>
    %c0_5 = arith.constant 0 : index
    %c0_6 = arith.constant 0 : index
    %11 = vector.load %arg2[%c0_5, %c0_6] : memref<8x8xf32, #tpu.memory_space<vmem>>, vector<8x8xf32>
    %cst = arith.constant dense<0.000000e+00> : vector<8x128xf32>
    %12 = tpu.matmul %11, %10, %cst {dimension_numbers = #tpu.dot_dimension_numbers<[1], [0], [0], [1], [0, 0, 1, 1], [], []>, precision = #tpu.contract_precision<fp32>} : vector<8x8xf32>, vector<8x128xf32>, vector<8x128xf32> -> vector<8x128xf32>
    %13 = vector.broadcast %3 : vector<8x1xf32> to vector<8x128xf32>
    %14 = arith.addf %12, %13 : vector<8x128xf32>
    %15 = arith.subf %14, %4 : vector<8x128xf32>
    %16 = arith.mulf %15, %15 : vector<8x128xf32>
    %c0_7 = arith.constant 0 : index
    %c0_8 = arith.constant 0 : index
    %17 = vector.load %arg6[%c0_7, %c0_8] : memref<8x128xf32, #tpu.memory_space<vmem>>, vector<8x128xf32>
    tpu.vector_store %arg6[%c0_7, %c0_8], %16 {strides = array<i32>} : memref<8x128xf32, #tpu.memory_space<vmem>>, vector<8x128xf32>,
    return
  }
  func.func @transform_0(%arg0: i32, %arg1: memref<1xi32, #tpu.memory_space<smem>>) -> (i32, i32) {
    %c0_i32 = arith.constant 0 : i32
    %c0_i32_0 = arith.constant 0 : i32
    %c0_i32_1 = arith.constant 0 : i32
    return %c0_i32, %c0_i32_0 : i32, i32
  }
  func.func @transform_1(%arg0: i32, %arg1: memref<1xi32, #tpu.memory_space<smem>>) -> (i32, i32) {
    %c0_i32 = arith.constant 0 : i32
    %c0_i32_0 = arith.constant 0 : i32
    return %c0_i32, %arg0 : i32, i32
  }
  func.func @transform_2(%arg0: i32, %arg1: memref<1xi32, #tpu.memory_space<smem>>) -> (i32, i32) {
    %c0_i32 = arith.constant 0 : i32
    %c0_i32_0 = arith.constant 0 : i32
    return %c0_i32, %arg0 : i32, i32
  }
  func.func @transform_3(%arg0: i32, %arg1: memref<1xi32, #tpu.memory_space<smem>>) -> (i32, i32) {
    %c0_i32 = arith.constant 0 : i32
    %c0_i32_0 = arith.constant 0 : i32
    %c0_i32_1 = arith.constant 0 : i32
    return %c0_i32, %c0_i32_0 : i32, i32
  }
  func.func @transform_4(%arg0: i32, %arg1: memref<1xi32, #tpu.memory_space<smem>>) -> (i32, i32) {
    %c0_i32 = arith.constant 0 : i32
    %c0_i32_0 = arith.constant 0 : i32
    return %c0_i32, %arg0 : i32, i32
  }
}

</mosaic_0001>

<llo_original>
// kernel: tpu_custom_call.1
$region0: #{tpu_custom_call.1}
  #allocation0 [shape = 'u32[]', space=smem, size = 0x4, offset = 0x4, fixed_abs, tag = 'smem constant byte address 0x4 - core index']
  #allocation1 [shape = 'u32[144,128]{1,0:T(1,128)}', space=vmem, size = 0x12000, scoped, tag = 'internal scratch']
  #allocation2 [shape = 's32[1]{0}', space=sflag, size = 0x4, scoped, tag = 'scoped memory for tpu_custom_call.1']
  #allocation3 [shape = 's32[1]{0:T(128)S(6)}', space=smem, size = 0x200, scoped, tag = 'prefetched SMEM operand 0']
  %s0 = inlined_call_operand.<no memory space> [shape: s32[1], index: 0, kind: input, shape index: {}]
  %s1 = inlined_call_operand.hbm [shape: f32[8,8], index: 1, kind: input, shape index: {}]
  %s2 = inlined_call_operand.vmem [shape: f32[8,256], index: 2, kind: input, shape index: {}]
  %s3 = inlined_call_operand.hbm [shape: f32[8,256], index: 3, kind: input, shape index: {}]
  %s4 = inlined_call_operand.vmem [shape: f32[8,3], index: 4, kind: input, shape index: {}]
  %s5 = inlined_call_operand.hbm [shape: f32[8,256], index: 5, kind: output, shape index: {}]
  %s6 = sld [smem:[#allocation0]]
  $region57: #{tpu_custom_call.1} parent=0
    _
  %s8 = ssub.s32 1, %s6
  %s9 = scalar_select 0, %s8, %s6
  %10 = sst [smem:[#allocation3]] %s0
  $region1: #{tpu_custom_call.1} parent=0
    #allocation4 [shape = 'u8[4096]{0}', space=vmem, size = 0x1000, scoped, tag = 'input window, operand 1, single buffered']
    #allocation5 [shape = 's32[2]{0}', space=sflag, size = 0x8, scoped, tag = 'scoped memory for tpu_custom_call.1']
    #allocation6 [shape = 's32[2]{0}', space=sflag, size = 0x8, scoped, tag = 'scoped memory for tpu_custom_call.1']
    #allocation7 [shape = 'u8[8192]{0}', space=vmem, size = 0x2000, scoped, tag = 'input window, operand 3']
    #allocation8 [shape = 's32[2]{0}', space=sflag, size = 0x8, scoped, tag = 'scoped memory for tpu_custom_call.1']
    #allocation9 [shape = 'u8[8192]{0}', space=vmem, size = 0x2000, scoped, tag = 'output window, operand 0']
    %11 = vsyncpa [#allocation5], 0
    %12 = vsyncpa [#allocation8], 0
    %s13 = scalar_lea.sflag [#allocation8], 1
    %14 = vsyncpa %s13, 0
    %15 = vsyncpa [#allocation6], 0
    %s16 = scalar_lea.sflag [#allocation6], 1
    %17 = vsyncpa %s16, 0
    loop: start=0, step=1, limit=4
    $region2: #{tpu_custom_call.1} parent=1 // loop_pre_header
      _
    $region3: #{tpu_custom_call.1} parent=1 // loop_header
      %s19 = sphi 0, %s23
      %p20 = scmp.ge.s32.totalorder %s19, 4
      %s27 = sphi 0, %s27
      %s29 = sphi 0, %s27
      %s30 = sphi 0, %s29
      %s44 = sphi 0, %s30
      %s50 = sphi 0, %s52
      %s53 = sphi 0, %s50
      %s54 = sphi 0, %s53
      %s70 = sphi 0, %s54
      %s76 = sphi 0, %s78
      %s79 = sphi 0, %s76
      %s80 = sphi 0, %s79
      %s96 = sphi 0, %s80
      %s100 = sphi 0, %s100
      %s102 = sphi 0, %s100
      %s103 = sphi 0, %s102
      %s117 = sphi 0, %s103
      %s123 = sphi 0, %s125
      %s126 = sphi 0, %s123
      %s127 = sphi 0, %s126
      %s143 = sphi 0, %s127
    $region4: #{tpu_custom_call.1} parent=1 // loop_header_branch
      %22 = sbr.rel (%p20) target = $region8
    $region5: #{tpu_custom_call.1} parent=1 // loop_body
      %s24 = ssub.s32 %s19, 1
      %s25 = ssub.s32 %s19, 2
      %s26 = sadd.s32 %s19, 1
      %s28 = sadd.s32 %s27, 1
      %p31 = scmp.eq.s32.totalorder %s19, 1
      %p32 = scmp.ne.s32.totalorder %s27, %s29
      %p33 = scmp.eq.s32.totalorder %s19, 0
      %p34 = por %p32, %p33
      %p35 = scmp.ne.s32.totalorder %s27, %s29
      %p36 = scmp.eq.s32.totalorder %s24, 1
      %p37 = por %p35, %p36
      %p38 = scmp.ne.s32.totalorder %s29, %s30
      %p39 = scmp.eq.s32.totalorder %s24, 0
      %p40 = por %p38, %p39
      %p41 = scmp.ne.s32.totalorder %s29, %s30
      %p42 = scmp.eq.s32.totalorder %s25, 1
      %p43 = por %p41, %p42
      %p45 = scmp.ne.s32.totalorder %s30, %s44
      %p46 = scmp.eq.s32.totalorder %s25, 0
      %p47 = por %p45, %p46
      %s48 = ssub.s32 %s19, %s26
      %p49 = scmp.eq.s32.totalorder %s48, 0
      %s51 = sadd.s32 %s50, 1
      %s52 = scalar_select %p49, %s50, %s51
      %p55 = pneg %p49
      %p56 = scmp.eq.s32.totalorder %s19, 1
      %p57 = por %p55, %p56
      %p58 = scmp.ne.s32.totalorder %s50, %s53
      %p59 = scmp.eq.s32.totalorder %s19, 0
      %p60 = por %p58, %p59
      %p61 = scmp.ne.s32.totalorder %s50, %s53
      %p62 = scmp.eq.s32.totalorder %s24, 1
      %p63 = por %p61, %p62
      %p64 = scmp.ne.s32.totalorder %s53, %s54
      %p65 = scmp.eq.s32.totalorder %s24, 0
      %p66 = por %p64, %p65
      %p67 = scmp.ne.s32.totalorder %s53, %s54
      %p68 = scmp.eq.s32.totalorder %s25, 1
      %p69 = por %p67, %p68
      %p71 = scmp.ne.s32.totalorder %s54, %s70
      %p72 = scmp.eq.s32.totalorder %s25, 0
      %p73 = por %p71, %p72
      %s74 = ssub.s32 %s19, %s26
      %p75 = scmp.eq.s32.totalorder %s74, 0
      %s77 = sadd.s32 %s76, 1
      %s78 = scalar_select %p75, %s76, %s77
      %p81 = pneg %p75
      %p82 = scmp.eq.s32.totalorder %s19, 1
      %p83 = por %p81, %p82
      %p84 = scmp.ne.s32.totalorder %s76, %s79
      %p85 = scmp.eq.s32.totalorder %s19, 0
      %p86 = por %p84, %p85
      %p87 = scmp.ne.s32.totalorder %s76, %s79
      %p88 = scmp.eq.s32.totalorder %s24, 1
      %p89 = por %p87, %p88
      %p90 = scmp.ne.s32.totalorder %s79, %s80
      %p91 = scmp.eq.s32.totalorder %s24, 0
      %p92 = por %p90, %p91
      %p93 = scmp.ne.s32.totalorder %s79, %s80
      %p94 = scmp.eq.s32.totalorder %s25, 1
      %p95 = por %p93, %p94
      %p97 = scmp.ne.s32.totalorder %s80, %s96
      %p98 = scmp.eq.s32.totalorder %s25, 0
      %p99 = por %p97, %p98
      %s101 = sadd.s32 %s100, 1
      %p104 = scmp.eq.s32.totalorder %s19, 1
      %p105 = scmp.ne.s32.totalorder %s100, %s102
      %p106 = scmp.eq.s32.totalorder %s19, 0
      %p107 = por %p105, %p106
      %p108 = scmp.ne.s32.totalorder %s100, %s102
      %p109 = scmp.eq.s32.totalorder %s24, 1
      %p110 = por %p108, %p109
      %p111 = scmp.ne.s32.totalorder %s102, %s103
      %p112 = scmp.eq.s32.totalorder %s24, 0
      %p113 = por %p111, %p112
      %p114 = scmp.ne.s32.totalorder %s102, %s103
      %p115 = scmp.eq.s32.totalorder %s25, 1
      %p116 = por %p114, %p115
      %p118 = scmp.ne.s32.totalorder %s103, %s117
      %p119 = scmp.eq.s32.totalorder %s25, 0
      %p120 = por %p118, %p119
      %s121 = ssub.s32 %s19, %s26
      %p122 = scmp.eq.s32.totalorder %s121, 0
      %s124 = sadd.s32 %s123, 1
      %s125 = scalar_select %p122, %s123, %s124
      %p128 = pneg %p122
      %p129 = scmp.eq.s32.totalorder %s19, 1
      %p130 = por %p128, %p129
      %p131 = scmp.ne.s32.totalorder %s123, %s126
      %p132 = scmp.eq.s32.totalorder %s19, 0
      %p133 = por %p131, %p132
      %p134 = scmp.ne.s32.totalorder %s123, %s126
      %p135 = scmp.eq.s32.totalorder %s24, 1
      %p136 = por %p134, %p135
      %p137 = scmp.ne.s32.totalorder %s126, %s127
      %p138 = scmp.eq.s32.totalorder %s24, 0
      %p139 = por %p137, %p138
      %p140 = scmp.ne.s32.totalorder %s126, %s127
      %p141 = scmp.eq.s32.totalorder %s25, 1
      %p142 = por %p140, %p141
      %p144 = scmp.ne.s32.totalorder %s127, %s143
      %p145 = scmp.eq.s32.totalorder %s25, 0
      %p146 = por %p144, %p145
      %p147 = scmp.le.s32.totalorder 1, %s19
      %p148 = scmp.lt.s32.totalorder %s19, 3
      %p149 = pnand %p147, %p148
      %p150 = pneg %p149
      // Predicated region
      $region9: #{tpu_custom_call.1} parent=5 // pred_check
        _
      $region10: #{tpu_custom_call.1} parent=5 // pred_check_branch
        %152 = sbr.rel (%p149) target = $region12
      $region11: #{tpu_custom_call.1} parent=5 // pred_region
        %s153 = ssub.s32 %s19, 1
        // Predicated region
        $region13: #{tpu_custom_call.1} parent=11 // pred_check
          %p154 = pneg %p40
        $region14: #{tpu_custom_call.1} parent=11 // pred_check_branch
          %156 = sbr.rel (%p154) target = $region16
        $region15: #{tpu_custom_call.1} parent=11 // pred_region
          %s158 = ssub.s32 128, 128
          %159 = vsyncadd [#allocation5], %s158
          %s161 = sshll.u32 [#allocation4], 4
          %s162 = int_to_ptr.vmem [resolvable:$true] %s161
          %164 = dma.hbm_to_vmem [thread:$0]  %s1, 128, %s162, [#allocation5]
        $region16: #{tpu_custom_call.1} parent=11 // pred_fallthru
          _
        // Predicated region
        $region17: #{tpu_custom_call.1} parent=11 // pred_check
          %p165 = pneg %p113
        $region18: #{tpu_custom_call.1} parent=11 // pred_check_branch
          %167 = sbr.rel (%p165) target = $region20
        $region19: #{tpu_custom_call.1} parent=11 // pred_region
          _
        $region20: #{tpu_custom_call.1} parent=11 // pred_fallthru
          _
      $region12: #{tpu_custom_call.1} parent=5 // pred_fallthru
        _
      %p168 = scmp.lt.s32.totalorder %s19, 2
      // Predicated region
      $region21: #{tpu_custom_call.1} parent=5 // pred_check
        %p169 = pneg %p168
      $region22: #{tpu_custom_call.1} parent=5 // pred_check_branch
        %171 = sbr.rel (%p169) target = $region24
      $region23: #{tpu_custom_call.1} parent=5 // pred_region
        // Predicated region
        $region25: #{tpu_custom_call.1} parent=23 // pred_check
          %p172 = pneg %p60
        $region26: #{tpu_custom_call.1} parent=23 // pred_check_branch
          %174 = sbr.rel (%p172) target = $region28
        $region27: #{tpu_custom_call.1} parent=23 // pred_region
          %p175 = scmp.lt.s32.totalorder %s19, 1
          %s176 = scalar_select %p175, %s19, 1
          %s177 = smul.addr %s176, 8
          %s178 = scalar_lea.vmem %s2, %s177
        $region28: #{tpu_custom_call.1} parent=23 // pred_fallthru
          _
        // Predicated region
        $region29: #{tpu_custom_call.1} parent=23 // pred_check
          %p179 = pneg %p86
        $region30: #{tpu_custom_call.1} parent=23 // pred_check_branch
          %181 = sbr.rel (%p179) target = $region32
        $region31: #{tpu_custom_call.1} parent=23 // pred_region
          %s182 = sand.u32 %s76, 1
          %s183 = scalar_lea.sflag [#allocation8], %s182
          %s184 = sand.u32 %s76, 1
          %s185 = smul.addr %s184, 8
          %s186 = scalar_lea.vmem [#allocation7], %s185
          %s188 = ssub.s32 128, 128
          %189 = vsyncadd %s183, %s188
          %s190 = smul.addr %s19, 128
          %s191 = scalar_lea.hbm %s3, %s190
          %s193 = sshll.u32 %s186, 4
          %s194 = int_to_ptr.vmem [resolvable:$true] %s193
          %196 = dma.hbm_to_vmem [thread:$0]  %s191, 128, %s194, %s183
        $region32: #{tpu_custom_call.1} parent=23 // pred_fallthru
          _
      $region24: #{tpu_custom_call.1} parent=5 // pred_fallthru
        _
      %p197 = scmp.le.s32.totalorder 1, %s19
      %p198 = scmp.lt.s32.totalorder %s19, 3
      %p199 = pnand %p197, %p198
      %p200 = pneg %p199
      // Predicated region
      $region33: #{tpu_custom_call.1} parent=5 // pred_check
        _
      $region34: #{tpu_custom_call.1} parent=5 // pred_check_branch
        %202 = sbr.rel (%p199) target = $region36
      $region35: #{tpu_custom_call.1} parent=5 // pred_region
        %s203 = ssub.s32 %s19, 1
        // Predicated region
        $region37: #{tpu_custom_call.1} parent=35 // pred_check
          %p204 = pneg %p40
        $region38: #{tpu_custom_call.1} parent=35 // pred_check_branch
          %206 = sbr.rel (%p204) target = $region40
        $region39: #{tpu_custom_call.1} parent=35 // pred_region
          %207 = dma.done [#allocation5], 128
        $region40: #{tpu_custom_call.1} parent=35 // pred_fallthru
          _
        %s208 = sand.u32 %s79, 1
        %s209 = scalar_lea.sflag [#allocation8], %s208
        %s210 = sand.u32 %s79, 1
        %s211 = smul.addr %s210, 8
        %s212 = scalar_lea.vmem [#allocation7], %s211
        // Predicated region
        $region41: #{tpu_custom_call.1} parent=35 // pred_check
          %p213 = pneg %p92
        $region42: #{tpu_custom_call.1} parent=35 // pred_check_branch
          %215 = sbr.rel (%p213) target = $region44
        $region43: #{tpu_custom_call.1} parent=35 // pred_region
          %216 = dma.done %s209, 128
        $region44: #{tpu_custom_call.1} parent=35 // pred_fallthru
          _
        %p217 = pneg %p40
        %p218 = pneg %p37
        %p219 = scmp.lt.s32.totalorder %s24, 1
        %s220 = scalar_select %p219, %s24, 1
        %s221 = smul.addr %s220, 8
        %s222 = scalar_lea.vmem %s2, %s221
        %p223 = pneg %p66
        %p224 = pneg %p63
        %s225 = sand.u32 %s79, 1
        %s226 = scalar_lea.sflag [#allocation8], %s225
        %s227 = sand.u32 %s79, 1
        %s228 = smul.addr %s227, 8
        %s229 = scalar_lea.vmem [#allocation7], %s228
        %p230 = pneg %p92
        %p231 = pneg %p89
        %p232 = pneg %p113
        %p233 = pneg %p110
        %p234 = pneg %p139
        %p235 = pneg %p136
        %s236 = sand.u32 %s126, 1
        %s237 = scalar_lea.sflag [#allocation6], %s236
        %s238 = sand.u32 %s126, 1
        %s239 = smul.addr %s238, 8
        %s240 = scalar_lea.vmem [#allocation9], %s239
        %p241 = scmp.lt.s32.totalorder %s24, 1
        %s242 = scalar_select %p241, %s24, 1
        %s243 = smul.addr %s242, 8
        %s244 = scalar_lea.vmem %s2, %s243
        %v245 = vld [vmem:[%s4] sm:$0xff]
        %v246 = vld [vmem:[%s212] sm:$0xff]
        %v247 = vld [vmem:[%s244] sm:$0xff]
        %249 = vset.pattern.permute.xlu0 0
        %250 = vperm.xlu0 %249, %v245
        %v251 = vpop.permute.xlu0 %250
        %v253 = vmul.f32 %v251, %v247
        %254 = vset.pattern.permute.xlu0 1
        %255 = vperm.xlu0 %254, %v245
        %v256 = vpop.permute.xlu0 %255
        %v258 = vmul.f32 %v256, %v246
        %v259 = vadd.f32 %v253, %v258
        %v260 = vld [vmem:[#allocation4] sm:$0xff]
        %261 = vset.pattern.permute.xlu0 2
        %262 = vperm.xlu0 %261, %v245
        %v263 = vpop.permute.xlu0 %262
        %vm265 = vcmask 64512
        %v267 = vsel %vm265, %v260, 0
        %269 = vmatprep.subr.mxu0 0.0
        %v270 = vand.u32 %v259, 4294901760
        %271 = vmatpush1.msra.mxu0 %v270
        %272 = vmatprep.subr.mxu0 0.0
        %273 = vmatpush1.msra.mxu0 0.0
        %274 = vmatprep.subr.mxu0 0.0
        %275 = vmatpush1.msra.mxu0 0.0
        %276 = vmatprep.subr.mxu0 0.0
        %277 = vmatpush1.msra.mxu0 0.0
        %278 = vmatprep.subr.mxu0 0.0
        %279 = vmatpush1.msra.mxu0 0.0
        %280 = vmatprep.subr.mxu0 0.0
        %281 = vmatpush1.msra.mxu0 0.0
        %282 = vmatprep.subr.mxu0 0.0
        %283 = vmatpush1.msra.mxu0 0.0
        %284 = vmatprep.subr.mxu0 0.0
        %285 = vmatpush1.msra.mxu0 0.0
        %286 = vmatprep.subr.mxu0 0.0
        %287 = vmatpush1.msra.mxu0 0.0
        %288 = vmatprep.subr.mxu0 0.0
        %289 = vmatpush1.msra.mxu0 0.0
        %290 = vmatprep.subr.mxu0 0.0
        %291 = vmatpush1.msra.mxu0 0.0
        %292 = vmatprep.subr.mxu0 0.0
        %293 = vmatpush1.msra.mxu0 0.0
        %294 = vmatprep.subr.mxu0 0.0
        %295 = vmatpush1.msra.mxu0 0.0
        %296 = vmatprep.subr.mxu0 0.0
        %297 = vmatpush1.msra.mxu0 0.0
        %298 = vmatprep.subr.mxu0 0.0
        %299 = vmatpush1.msra.mxu0 0.0
        %300 = vmatprep.subr.mxu0 0.0
        %301 = vmatpush1.msra.mxu0 0.0
        %302 = vmatprep.subr.mxu0 0.0
        %303 = vmatpush1.msra.mxu0 0.0
        %304 = vmatprep.subr.mxu0 0.0
        %305 = vmatpush1.msra.mxu0 0.0
        %306 = vmatprep.subr.mxu0 0.0
        %307 = vmatpush1.msra.mxu0 0.0
        %308 = vmatprep.subr.mxu0 0.0
        %309 = vmatpush1.msra.mxu0 0.0
        %310 = vmatprep.subr.mxu0 0.0
        %311 = vmatpush1.msra.mxu0 0.0
        %312 = vmatprep.subr.mxu0 0.0
        %313 = vmatpush1.msra.mxu0 0.0
        %314 = vmatprep.subr.mxu0 0.0
        %315 = vmatpush1.msra.mxu0 0.0
        %316 = vmatprep.subr.mxu0 0.0
        %317 = vmatpush1.msra.mxu0 0.0
        %318 = vmatprep.subr.mxu0 0.0
        %319 = vmatpush1.msra.mxu0 0.0
        %320 = vmatprep.subr.mxu0 0.0
        %321 = vmatpush1.msra.mxu0 0.0
        %322 = vmatprep.subr.mxu0 0.0
        %323 = vmatpush1.msra.mxu0 0.0
        %324 = vmatprep.subr.mxu0 0.0
        %325 = vmatpush1.msra.mxu0 0.0
        %326 = vmatprep.subr.mxu0 0.0
        %327 = vmatpush1.msra.mxu0 0.0
        %328 = vmatprep.subr.mxu0 0.0
        %329 = vmatpush1.msra.mxu0 0.0
        %330 = vmatprep.subr.mxu0 0.0
        %331 = vmatpush1.msra.mxu0 0.0
        %332 = vmatprep.subr.mxu0 0.0
        %333 = vmatpush1.msra.mxu0 0.0
        %334 = vmatprep.mubr.f32.mxu0 0.0
        %v335 = vand.u32 %v267, 4294901760
        %v336 = vsub.f32 %v267, %v335
        %v337 = vand.u32 %v336, 4294901760
        %v338 = vsub.f32 %v336, %v337
        %v339 = vand.u32 %v338, 4294901760
        %340 = vmatmul.mubr.f32.gmra.mrb[0].mxu0 %v339
        %v341 = vpop.f32.mrb[0].mxu0
        %v342 = vadd.f32 %v263, %v341
        %v343 = vpop.f32.mrb[0].mxu0
        %344 = vdwg.mxu0
        %345 = vmatprep.subr.mxu0 0.0
        %v346 = vand.u32 %v259, 4294901760
        %v347 = vsub.f32 %v259, %v346
        %v348 = vand.u32 %v347, 4294901760
        %v349 = vsub.f32 %v347, %v348
        %v350 = vand.u32 %v349, 4294901760
        %351 = vmatpush1.msra.mxu0 %v350
        %352 = vmatprep.subr.mxu0 0.0
        %353 = vmatpush1.msra.mxu0 0.0
        %354 = vmatprep.subr.mxu0 0.0
        %355 = vmatpush1.msra.mxu0 0.0
        %356 = vmatprep.subr.mxu0 0.0
        %357 = vmatpush1.msra.mxu0 0.0
        %358 = vmatprep.subr.mxu0 0.0
        %359 = vmatpush1.msra.mxu0 0.0
        %360 = vmatprep.subr.mxu0 0.0
        %361 = vmatpush1.msra.mxu0 0.0
        %362 = vmatprep.subr.mxu0 0.0
        %363 = vmatpush1.msra.mxu0 0.0
        %364 = vmatprep.subr.mxu0 0.0
        %365 = vmatpush1.msra.mxu0 0.0
        %366 = vmatprep.subr.mxu0 0.0
        %367 = vmatpush1.msra.mxu0 0.0
        %368 = vmatprep.subr.mxu0 0.0
        %369 = vmatpush1.msra.mxu0 0.0
        %370 = vmatprep.subr.mxu0 0.0
        %371 = vmatpush1.msra.mxu0 0.0
        %372 = vmatprep.subr.mxu0 0.0
        %373 = vmatpush1.msra.mxu0 0.0
        %374 = vmatprep.subr.mxu0 0.0
        %375 = vmatpush1.msra.mxu0 0.0
        %376 = vmatprep.subr.mxu0 0.0
        %377 = vmatpush1.msra.mxu0 0.0
        %378 = vmatprep.subr.mxu0 0.0
        %379 = vmatpush1.msra.mxu0 0.0
        %380 = vmatprep.subr.mxu0 0.0
        %381 = vmatpush1.msra.mxu0 0.0
        %382 = vmatprep.subr.mxu0 0.0
        %383 = vmatpush1.msra.mxu0 0.0
        %384 = vmatprep.subr.mxu0 0.0
        %385 = vmatpush1.msra.mxu0 0.0
        %386 = vmatprep.subr.mxu0 0.0
        %387 = vmatpush1.msra.mxu0 0.0
        %388 = vmatprep.subr.mxu0 0.0
        %389 = vmatpush1.msra.mxu0 0.0
        %390 = vmatprep.subr.mxu0 0.0
        %391 = vmatpush1.msra.mxu0 0.0
        %392 = vmatprep.subr.mxu0 0.0
        %393 = vmatpush1.msra.mxu0 0.0
        %394 = vmatprep.subr.mxu0 0.0
        %395 = vmatpush1.msra.mxu0 0.0
        %396 = vmatprep.subr.mxu0 0.0
        %397 = vmatpush1.msra.mxu0 0.0
        %398 = vmatprep.subr.mxu0 0.0
        %399 = vmatpush1.msra.mxu0 0.0
        %400 = vmatprep.subr.mxu0 0.0
        %401 = vmatpush1.msra.mxu0 0.0
        %402 = vmatprep.subr.mxu0 0.0
        %403 = vmatpush1.msra.mxu0 0.0
        %404 = vmatprep.subr.mxu0 0.0
        %405 = vmatpush1.msra.mxu0 0.0
        %406 = vmatprep.subr.mxu0 0.0
        %407 = vmatpush1.msra.mxu0 0.0
        %408 = vmatprep.subr.mxu0 0.0
        %409 = vmatpush1.msra.mxu0 0.0
        %410 = vmatprep.subr.mxu0 0.0
        %411 = vmatpush1.msra.mxu0 0.0
        %412 = vmatprep.subr.mxu0 0.0
        %413 = vmatpush1.msra.mxu0 0.0
        %414 = vmatprep.mubr.f32.mxu0 0.0
        %v415 = vand.u32 %v267, 4294901760
        %416 = vmatmul.mubr.f32.gmra.mrb[0].mxu0 %v415
        %v417 = vpop.f32.mrb[0].mxu0
        %v418 = vadd.f32 %v342, %v417
        %v419 = vpop.f32.mrb[0].mxu0
        %420 = vdwg.mxu0
        %421 = vmatprep.subr.mxu0 0.0
        %v422 = vand.u32 %v259, 4294901760
        %v423 = vsub.f32 %v259, %v422
        %424 = vmatpush1.msra.mxu0 %v423
        %425 = vmatprep.subr.mxu0 0.0
        %426 = vmatpush1.msra.mxu0 0.0
        %427 = vmatprep.subr.mxu0 0.0
        %428 = vmatpush1.msra.mxu0 0.0
        %429 = vmatprep.subr.mxu0 0.0
        %430 = vmatpush1.msra.mxu0 0.0
        %431 = vmatprep.subr.mxu0 0.0
        %432 = vmatpush1.msra.mxu0 0.0
        %433 = vmatprep.subr.mxu0 0.0
        %434 = vmatpush1.msra.mxu0 0.0
        %435 = vmatprep.subr.mxu0 0.0
        %436 = vmatpush1.msra.mxu0 0.0
        %437 = vmatprep.subr.mxu0 0.0
        %438 = vmatpush1.msra.mxu0 0.0
        %439 = vmatprep.subr.mxu0 0.0
        %440 = vmatpush1.msra.mxu0 0.0
        %441 = vmatprep.subr.mxu0 0.0
        %442 = vmatpush1.msra.mxu0 0.0
        %443 = vmatprep.subr.mxu0 0.0
        %444 = vmatpush1.msra.mxu0 0.0
        %445 = vmatprep.subr.mxu0 0.0
        %446 = vmatpush1.msra.mxu0 0.0
        %447 = vmatprep.subr.mxu0 0.0
        %448 = vmatpush1.msra.mxu0 0.0
        %449 = vmatprep.subr.mxu0 0.0
        %450 = vmatpush1.msra.mxu0 0.0
        %451 = vmatprep.subr.mxu0 0.0
        %452 = vmatpush1.msra.mxu0 0.0
        %453 = vmatprep.subr.mxu0 0.0
        %454 = vmatpush1.msra.mxu0 0.0
        %455 = vmatprep.subr.mxu0 0.0
        %456 = vmatpush1.msra.mxu0 0.0
        %457 = vmatprep.subr.mxu0 0.0
        %458 = vmatpush1.msra.mxu0 0.0
        %459 = vmatprep.subr.mxu0 0.0
        %460 = vmatpush1.msra.mxu0 0.0
        %461 = vmatprep.subr.mxu0 0.0
        %462 = vmatpush1.msra.mxu0 0.0
        %463 = vmatprep.subr.mxu0 0.0
        %464 = vmatpush1.msra.mxu0 0.0
        %465 = vmatprep.subr.mxu0 0.0
        %466 = vmatpush1.msra.mxu0 0.0
        %467 = vmatprep.subr.mxu0 0.0
        %468 = vmatpush1.msra.mxu0 0.0
        %469 = vmatprep.subr.mxu0 0.0
        %470 = vmatpush1.msra.mxu0 0.0
        %471 = vmatprep.subr.mxu0 0.0
        %472 = vmatpush1.msra.mxu0 0.0
        %473 = vmatprep.subr.mxu0 0.0
        %474 = vmatpush1.msra.mxu0 0.0
        %475 = vmatprep.subr.mxu0 0.0
        %476 = vmatpush1.msra.mxu0 0.0
        %477 = vmatprep.subr.mxu0 0.0
        %478 = vmatpush1.msra.mxu0 0.0
        %479 = vmatprep.subr.mxu0 0.0
        %480 = vmatpush1.msra.mxu0 0.0
        %481 = vmatprep.subr.mxu0 0.0
        %482 = vmatpush1.msra.mxu0 0.0
        %483 = vmatprep.subr.mxu0 0.0
        %484 = vmatpush1.msra.mxu0 0.0
        %485 = vmatprep.subr.mxu0 0.0
        %486 = vmatpush1.msra.mxu0 0.0
        %487 = vmatprep.mubr.f32.mxu0 0.0
        %v488 = vand.u32 %v267, 4294901760
        %v489 = vsub.f32 %v267, %v488
        %490 = vmatmul.mubr.f32.gmra.mrb[0].mxu0 %v489
        %v491 = vpop.f32.mrb[0].mxu0
        %v492 = vadd.f32 %v418, %v491
        %v493 = vpop.f32.mrb[0].mxu0
        %494 = vdwg.mxu0
        %495 = vmatprep.subr.mxu0 0.0
        %v496 = vand.u32 %v259, 4294901760
        %497 = vmatpush1.msra.mxu0 %v496
        %498 = vmatprep.subr.mxu0 0.0
        %499 = vmatpush1.msra.mxu0 0.0
        %500 = vmatprep.subr.mxu0 0.0
        %501 = vmatpush1.msra.mxu0 0.0
        %502 = vmatprep.subr.mxu0 0.0
        %503 = vmatpush1.msra.mxu0 0.0
        %504 = vmatprep.subr.mxu0 0.0
        %505 = vmatpush1.msra.mxu0 0.0
        %506 = vmatprep.subr.mxu0 0.0
        %507 = vmatpush1.msra.mxu0 0.0
        %508 = vmatprep.subr.mxu0 0.0
        %509 = vmatpush1.msra.mxu0 0.0
        %510 = vmatprep.subr.mxu0 0.0
        %511 = vmatpush1.msra.mxu0 0.0
        %512 = vmatprep.subr.mxu0 0.0
        %513 = vmatpush1.msra.mxu0 0.0
        %514 = vmatprep.subr.mxu0 0.0
        %515 = vmatpush1.msra.mxu0 0.0
        %516 = vmatprep.subr.mxu0 0.0
        %517 = vmatpush1.msra.mxu0 0.0
        %518 = vmatprep.subr.mxu0 0.0
        %519 = vmatpush1.msra.mxu0 0.0
        %520 = vmatprep.subr.mxu0 0.0
        %521 = vmatpush1.msra.mxu0 0.0
        %522 = vmatprep.subr.mxu0 0.0
        %523 = vmatpush1.msra.mxu0 0.0
        %524 = vmatprep.subr.mxu0 0.0
        %525 = vmatpush1.msra.mxu0 0.0
        %526 = vmatprep.subr.mxu0 0.0
        %527 = vmatpush1.msra.mxu0 0.0
        %528 = vmatprep.subr.mxu0 0.0
        %529 = vmatpush1.msra.mxu0 0.0
        %530 = vmatprep.subr.mxu0 0.0
        %531 = vmatpush1.msra.mxu0 0.0
        %532 = vmatprep.subr.mxu0 0.0
        %533 = vmatpush1.msra.mxu0 0.0
        %534 = vmatprep.subr.mxu0 0.0
        %535 = vmatpush1.msra.mxu0 0.0
        %536 = vmatprep.subr.mxu0 0.0
        %537 = vmatpush1.msra.mxu0 0.0
        %538 = vmatprep.subr.mxu0 0.0
        %539 = vmatpush1.msra.mxu0 0.0
        %540 = vmatprep.subr.mxu0 0.0
        %541 = vmatpush1.msra.mxu0 0.0
        %542 = vmatprep.subr.mxu0 0.0
        %543 = vmatpush1.msra.mxu0 0.0
        %544 = vmatprep.subr.mxu0 0.0
        %545 = vmatpush1.msra.mxu0 0.0
        %546 = vmatprep.subr.mxu0 0.0
        %547 = vmatpush1.msra.mxu0 0.0
        %548 = vmatprep.subr.mxu0 0.0
        %549 = vmatpush1.msra.mxu0 0.0
        %550 = vmatprep.subr.mxu0 0.0
        %551 = vmatpush1.msra.mxu0 0.0
        %552 = vmatprep.subr.mxu0 0.0
        %553 = vmatpush1.msra.mxu0 0.0
        %554 = vmatprep.subr.mxu0 0.0
        %555 = vmatpush1.msra.mxu0 0.0
        %556 = vmatprep.subr.mxu0 0.0
        %557 = vmatpush1.msra.mxu0 0.0
        %558 = vmatprep.subr.mxu0 0.0
        %559 = vmatpush1.msra.mxu0 0.0
        %560 = vmatprep.mubr.f32.mxu0 0.0
        %v561 = vand.u32 %v267, 4294901760
        %v562 = vsub.f32 %v267, %v561
        %v563 = vand.u32 %v562, 4294901760
        %564 = vmatmul.mubr.f32.gmra.mrb[0].mxu0 %v563
        %v565 = vpop.f32.mrb[0].mxu0
        %v566 = vadd.f32 %v492, %v565
        %v567 = vpop.f32.mrb[0].mxu0
        %568 = vdwg.mxu0
        %569 = vmatprep.subr.mxu0 0.0
        %v570 = vand.u32 %v259, 4294901760
        %v571 = vsub.f32 %v259, %v570
        %v572 = vand.u32 %v571, 4294901760
        %573 = vmatpush1.msra.mxu0 %v572
        %574 = vmatprep.subr.mxu0 0.0
        %575 = vmatpush1.msra.mxu0 0.0
        %576 = vmatprep.subr.mxu0 0.0
        %577 = vmatpush1.msra.mxu0 0.0
        %578 = vmatprep.subr.mxu0 0.0
        %579 = vmatpush1.msra.mxu0 0.0
        %580 = vmatprep.subr.mxu0 0.0
        %581 = vmatpush1.msra.mxu0 0.0
        %582 = vmatprep.subr.mxu0 0.0
        %583 = vmatpush1.msra.mxu0 0.0
        %584 = vmatprep.subr.mxu0 0.0
        %585 = vmatpush1.msra.mxu0 0.0
        %586 = vmatprep.subr.mxu0 0.0
        %587 = vmatpush1.msra.mxu0 0.0
        %588 = vmatprep.subr.mxu0 0.0
        %589 = vmatpush1.msra.mxu0 0.0
        %590 = vmatprep.subr.mxu0 0.0
        %591 = vmatpush1.msra.mxu0 0.0
        %592 = vmatprep.subr.mxu0 0.0
        %593 = vmatpush1.msra.mxu0 0.0
        %594 = vmatprep.subr.mxu0 0.0
        %595 = vmatpush1.msra.mxu0 0.0
        %596 = vmatprep.subr.mxu0 0.0
        %597 = vmatpush1.msra.mxu0 0.0
        %598 = vmatprep.subr.mxu0 0.0
        %599 = vmatpush1.msra.mxu0 0.0
        %600 = vmatprep.subr.mxu0 0.0
        %601 = vmatpush1.msra.mxu0 0.0
        %602 = vmatprep.subr.mxu0 0.0
        %603 = vmatpush1.msra.mxu0 0.0
        %604 = vmatprep.subr.mxu0 0.0
        %605 = vmatpush1.msra.mxu0 0.0
        %606 = vmatprep.subr.mxu0 0.0
        %607 = vmatpush1.msra.mxu0 0.0
        %608 = vmatprep.subr.mxu0 0.0
        %609 = vmatpush1.msra.mxu0 0.0
        %610 = vmatprep.subr.mxu0 0.0
        %611 = vmatpush1.msra.mxu0 0.0
        %612 = vmatprep.subr.mxu0 0.0
        %613 = vmatpush1.msra.mxu0 0.0
        %614 = vmatprep.subr.mxu0 0.0
        %615 = vmatpush1.msra.mxu0 0.0
        %616 = vmatprep.subr.mxu0 0.0
        %617 = vmatpush1.msra.mxu0 0.0
        %618 = vmatprep.subr.mxu0 0.0
        %619 = vmatpush1.msra.mxu0 0.0
        %620 = vmatprep.subr.mxu0 0.0
        %621 = vmatpush1.msra.mxu0 0.0
        %622 = vmatprep.subr.mxu0 0.0
        %623 = vmatpush1.msra.mxu0 0.0
        %624 = vmatprep.subr.mxu0 0.0
        %625 = vmatpush1.msra.mxu0 0.0
        %626 = vmatprep.subr.mxu0 0.0
        %627 = vmatpush1.msra.mxu0 0.0
        %628 = vmatprep.subr.mxu0 0.0
        %629 = vmatpush1.msra.mxu0 0.0
        %630 = vmatprep.subr.mxu0 0.0
        %631 = vmatpush1.msra.mxu0 0.0
        %632 = vmatprep.subr.mxu0 0.0
        %633 = vmatpush1.msra.mxu0 0.0
        %634 = vmatprep.subr.mxu0 0.0
        %635 = vmatpush1.msra.mxu0 0.0
        %636 = vmatprep.mubr.f32.mxu0 0.0
        %v637 = vand.u32 %v267, 4294901760
        %638 = vmatmul.mubr.f32.gmra.mrb[0].mxu0 %v637
        %v639 = vpop.f32.mrb[0].mxu0
        %v640 = vadd.f32 %v566, %v639
        %v641 = vpop.f32.mrb[0].mxu0
        %642 = vdwg.mxu0
        %643 = vmatprep.subr.mxu0 0.0
        %v644 = vand.u32 %v259, 4294901760
        %645 = vmatpush1.msra.mxu0 %v644
        %646 = vmatprep.subr.mxu0 0.0
        %647 = vmatpush1.msra.mxu0 0.0
        %648 = vmatprep.subr.mxu0 0.0
        %649 = vmatpush1.msra.mxu0 0.0
        %650 = vmatprep.subr.mxu0 0.0
        %651 = vmatpush1.msra.mxu0 0.0
        %652 = vmatprep.subr.mxu0 0.0
        %653 = vmatpush1.msra.mxu0 0.0
        %654 = vmatprep.subr.mxu0 0.0
        %655 = vmatpush1.msra.mxu0 0.0
        %656 = vmatprep.subr.mxu0 0.0
        %657 = vmatpush1.msra.mxu0 0.0
        %658 = vmatprep.subr.mxu0 0.0
        %659 = vmatpush1.msra.mxu0 0.0
        %660 = vmatprep.subr.mxu0 0.0
        %661 = vmatpush1.msra.mxu0 0.0
        %662 = vmatprep.subr.mxu0 0.0
        %663 = vmatpush1.msra.mxu0 0.0
        %664 = vmatprep.subr.mxu0 0.0
        %665 = vmatpush1.msra.mxu0 0.0
        %666 = vmatprep.subr.mxu0 0.0
        %667 = vmatpush1.msra.mxu0 0.0
        %668 = vmatprep.subr.mxu0 0.0
        %669 = vmatpush1.msra.mxu0 0.0
        %670 = vmatprep.subr.mxu0 0.0
        %671 = vmatpush1.msra.mxu0 0.0
        %672 = vmatprep.subr.mxu0 0.0
        %673 = vmatpush1.msra.mxu0 0.0
        %674 = vmatprep.subr.mxu0 0.0
        %675 = vmatpush1.msra.mxu0 0.0
        %676 = vmatprep.subr.mxu0 0.0
        %677 = vmatpush1.msra.mxu0 0.0
        %678 = vmatprep.subr.mxu0 0.0
        %679 = vmatpush1.msra.mxu0 0.0
        %680 = vmatprep.subr.mxu0 0.0
        %681 = vmatpush1.msra.mxu0 0.0
        %682 = vmatprep.subr.mxu0 0.0
        %683 = vmatpush1.msra.mxu0 0.0
        %684 = vmatprep.subr.mxu0 0.0
        %685 = vmatpush1.msra.mxu0 0.0
        %686 = vmatprep.subr.mxu0 0.0
        %687 = vmatpush1.msra.mxu0 0.0
        %688 = vmatprep.subr.mxu0 0.0
        %689 = vmatpush1.msra.mxu0 0.0
        %690 = vmatprep.subr.mxu0 0.0
        %691 = vmatpush1.msra.mxu0 0.0
        %692 = vmatprep.subr.mxu0 0.0
        %693 = vmatpush1.msra.mxu0 0.0
        %694 = vmatprep.subr.mxu0 0.0
        %695 = vmatpush1.msra.mxu0 0.0
        %696 = vmatprep.subr.mxu0 0.0
        %697 = vmatpush1.msra.mxu0 0.0
        %698 = vmatprep.subr.mxu0 0.0
        %699 = vmatpush1.msra.mxu0 0.0
        %700 = vmatprep.subr.mxu0 0.0
        %701 = vmatpush1.msra.mxu0 0.0
        %702 = vmatprep.subr.mxu0 0.0
        %703 = vmatpush1.msra.mxu0 0.0
        %704 = vmatprep.subr.mxu0 0.0
        %705 = vmatpush1.msra.mxu0 0.0
        %706 = vmatprep.subr.mxu0 0.0
        %707 = vmatpush1.msra.mxu0 0.0
        %708 = vmatprep.mubr.f32.mxu0 0.0
        %v709 = vand.u32 %v267, 4294901760
        %710 = vmatmul.mubr.f32.gmra.mrb[0].mxu0 %v709
        %v711 = vpop.f32.mrb[0].mxu0
        %v712 = vadd.f32 %v640, %v711
        %v713 = vpop.f32.mrb[0].mxu0
        %714 = vdwg.mxu0
        %v715 = vsub.f32 %v712, %v246
        %v716 = vmul.f32 %v715, %v715
        %717 = vst [vmem:[%s240] sm:$0xff] %v716
        %s718 = sand.u32 %s126, 1
        %s719 = scalar_lea.sflag [#allocation6], %s718
        %s720 = sand.u32 %s126, 1
        %s721 = smul.addr %s720, 8
        %s722 = scalar_lea.vmem [#allocation9], %s721
        // Predicated region
        $region45: #{tpu_custom_call.1} parent=35 // pred_check
          %p723 = pneg %p136
        $region46: #{tpu_custom_call.1} parent=35 // pred_check_branch
          %725 = sbr.rel (%p723) target = $region48
        $region47: #{tpu_custom_call.1} parent=35 // pred_region
          %s727 = ssub.s32 128, 128
          %728 = vsyncadd %s719, %s727
          %s729 = smul.addr %s24, 128
          %s730 = scalar_lea.hbm %s5, %s729
          %s732 = sshll.u32 %s722, 4
          %s733 = int_to_ptr.vmem [resolvable:$true] %s732
          %735 = dma.vmem_to_hbm [thread:$0]  %s733, 128, %s730, %s719
        $region48: #{tpu_custom_call.1} parent=35 // pred_fallthru
          _
      $region36: #{tpu_custom_call.1} parent=5 // pred_fallthru
        _
      %p736 = scmp.le.s32.totalorder 2, %s19
      // Predicated region
      $region49: #{tpu_custom_call.1} parent=5 // pred_check
        %p737 = pneg %p736
      $region50: #{tpu_custom_call.1} parent=5 // pred_check_branch
        %739 = sbr.rel (%p737) target = $region52
      $region51: #{tpu_custom_call.1} parent=5 // pred_region
        %s740 = ssub.s32 %s19, 2
        // Predicated region
        $region53: #{tpu_custom_call.1} parent=51 // pred_check
          %p741 = pneg %p142
        $region54: #{tpu_custom_call.1} parent=51 // pred_check_branch
          %743 = sbr.rel (%p741) target = $region56
        $region55: #{tpu_custom_call.1} parent=51 // pred_region
          %s744 = sand.u32 %s127, 1
          %s745 = scalar_lea.sflag [#allocation6], %s744
          %s746 = sand.u32 %s127, 1
          %s747 = smul.addr %s746, 8
          %s748 = scalar_lea.vmem [#allocation9], %s747
          %749 = dma.done %s745, 128
        $region56: #{tpu_custom_call.1} parent=51 // pred_fallthru
          _
      $region52: #{tpu_custom_call.1} parent=5 // pred_fallthru
        _
    $region6: #{tpu_custom_call.1} parent=1 // loop_footer
      %s23 = sadd.s32 1, %s19
    $region7: #{tpu_custom_call.1} parent=1 // loop_footer_branch
      %18 = sbr.rel target = $region3
    $region8: #{tpu_custom_call.1} parent=1 // loop_exit
      _
    %750 = vsyncpa [#allocation5], 1
    %s751 = scalar_lea.sflag [#allocation5], 1
    %752 = vsyncpa %s751, 1
    %753 = vsyncpa [#allocation8], 1
    %s754 = scalar_lea.sflag [#allocation8], 1
    %755 = vsyncpa %s754, 1
    %756 = vsyncpa [#allocation6], 1
    %s757 = scalar_lea.sflag [#allocation6], 1
    %758 = vsyncpa %s757, 1

</llo_original>
